<compile_context>
chip_gen: v7x
topology: tpu7x:2x2x1
jax: 0.10.0
libtpu: 0.0.40
codegen_flags: <defaults>
</compile_context>

<pallas_src>
import functools

import jax
import jax.numpy as jnp
from jax.experimental import pallas as pl
from jax.experimental.pallas import tpu as pltpu

# Leading "parallel" grid axis size (v7x has 2 TensorCores; the extra slice is
# a cheap fully-masked pass on 1-TC chips).
_NUM_CORE_SLICES = 2


def _accuracy_kernel(pred_ref, target_ref, out_ref, *,
                     topk, thresh, n_total, tile_n, tiles_per_core):
    """Process one (tile_n, C) tile and accumulate per-k correct counts.

    pred_ref:   (tile_n, C) native dtype VMEM
    target_ref: (tile_n, 1) int32 VMEM
    out_ref:    (1, 1, len(topk)) int32  -- per-core-slice counts (resident
                across the inner reduction axis; acts as the accumulator)
    """
    c_id = pl.program_id(0)      # core-slice index (parallel axis)
    t_id = pl.program_id(1)      # tile index within the slice (reduction axis)

    @pl.when(t_id == 0)
    def _init():
        out_ref[...] = jnp.zeros_like(out_ref)

    pred = pred_ref[...].astype(jnp.float32)          # cast after DMA
    tgt = target_ref[...]                             # (tile_n, 1) int32
    tn, nc = pred.shape

    class_idx = jax.lax.broadcasted_iota(jnp.int32, (tn, nc), 1)   # (tn, C)
    onehot = class_idx == tgt                                      # (tn, C)
    # Target-class score (exactly one True per valid row).
    tgt_score = jnp.sum(jnp.where(onehot, pred, 0.0),
                        axis=-1, keepdims=True)                    # (tn, 1)

    # torch.topk rank: strictly-higher scores + equal scores at lower index.
    higher = pred > tgt_score
    tie_lower = (pred == tgt_score) & (class_idx < tgt)
    rank = jnp.sum((higher | tie_lower).astype(jnp.int32),
                   axis=-1, keepdims=True)                         # (tn, 1)

    # Mask rows beyond the end of the array (partial last tile / surplus core
    # slice); global row index is derived from the logical grid position.
    row = jax.lax.broadcasted_iota(jnp.int32, (tn, 1), 0)
    offset = (c_id * tiles_per_core + t_id) * tile_n
    valid = (row + offset) < n_total                               # (tn, 1)
    if thresh is not None:
        valid = valid & (tgt_score > jnp.float32(thresh))

    # Fused per-k counting: one (tn, K) compare + one sublane reduction.
    lk = len(topk)
    lane = jax.lax.broadcasted_iota(jnp.int32, (1, lk), 1)
    k_vec = jnp.zeros((1, lk), jnp.int32)
    for j, k in enumerate(topk):                                   # static k's
        k_vec = jnp.where(lane == j, jnp.int32(k), k_vec)
    correct = (rank < k_vec) & valid                               # (tn, lk)
    tile_counts = jnp.sum(correct.astype(jnp.int32),
                          axis=0, keepdims=True)                   # (1, lk)
    out_ref[...] += tile_counts.reshape(1, 1, lk)


def accuracy_pallas(pred, target, topk=(1,), thresh=None, tile_n=1024):
    """Pallas equivalent of `accuracy(pred, target, topk, thresh)`.

    Args:
      pred:   (N, num_class) or (N, num_class, *spatial) array (any float dtype).
      target: (N,) or (N, *spatial) integer array.
      topk:   int or tuple of ints.
      thresh: optional float threshold on the prediction score.
      tile_n: requested sample-tile size (auto-shrunk to fit the VMEM budget).

    Returns:
      Scalar (if topk is an int) or list of scalars (if topk is a tuple).
    """
    if isinstance(topk, list):
        topk = tuple(topk)
    assert isinstance(topk, (int, tuple))
    if isinstance(topk, int):
        topk = (topk,)
        return_single = True
    else:
        return_single = False

    maxk = max(topk)
    if pred.shape[0] == 0:
        accs = [jnp.float32(0.0) for _ in range(len(topk))]
        return accs[0] if return_single else accs

    assert pred.ndim == target.ndim + 1
    assert pred.shape[0] == target.shape[0]
    assert maxk <= pred.shape[1], (
        f"maxk {maxk} exceeds pred dimension {pred.shape[1]}")

    # Generalize (N, C, *spatial)/(N, *spatial) to the flat (M, C)/(M,) case.
    # Matches torch's all_size = N * prod(spatial).
    if pred.ndim > 2:
        pred2 = jnp.moveaxis(pred, 1, -1).reshape(-1, pred.shape[1])
        target2 = target.reshape(-1)
    else:
        pred2, target2 = pred, target

    n, c = pred2.shape
    lk = len(topk)
    target_2d = target2.astype(jnp.int32).reshape(n, 1)

    # ---- Tile sizing: multiple of 8 sublanes (or full N), bounded by a VMEM
    #      budget so double-buffered tiles fit the smallest scoped default.
    itemsize = jnp.dtype(pred2.dtype).itemsize
    tile_budget_bytes = 4 * 1024 * 1024
    max_rows = max(8, (tile_budget_bytes // max(1, c * itemsize)) // 8 * 8)
    tn = max(8, min((int(tile_n) // 8) * 8, max_rows))
    if n <= tn:
        tn = n                                    # full-dim block is allowed
    num_tiles = -(-n // tn)
    tiles_per_core = -(-num_tiles // _NUM_CORE_SLICES)

    def row_block(cc, ii):
        # Clamp surplus slices of the leading parallel axis onto a real block;
        # their contribution is zeroed in-kernel by the row-validity mask.
        return (jnp.minimum(cc * tiles_per_core + ii, num_tiles - 1), 0)

    cost = pl.CostEstimate(
        flops=8 * n * c,
        transcendentals=0,
        bytes_accessed=n * c * itemsize + n * 4 + _NUM_CORE_SLICES * lk * 4,
    )

    counts = pl.pallas_call(
        functools.partial(_accuracy_kernel, topk=topk, thresh=thresh,
                          n_total=n, tile_n=tn, tiles_per_core=tiles_per_core),
        out_shape=jax.ShapeDtypeStruct((_NUM_CORE_SLICES, 1, lk), jnp.int32),
        grid=(_NUM_CORE_SLICES, tiles_per_core),
        in_specs=[
            pl.BlockSpec((tn, c), row_block),
            pl.BlockSpec((tn, 1), row_block),
        ],
        out_specs=pl.BlockSpec((1, 1, lk), lambda cc, ii: (cc, 0, 0)),
        compiler_params=pltpu.CompilerParams(
            dimension_semantics=("parallel", "arbitrary"),
            vmem_limit_bytes=32 * 1024 * 1024),
        cost_estimate=cost,
    )(pred2, target_2d)

    total = jnp.sum(counts, axis=(0, 1))                 # (lk,) int32
    scale = jnp.float32(100.0 / n)
    accs = [total[i].astype(jnp.float32) * scale for i in range(lk)]
    return accs[0] if return_single else accs


class AccuracyPallas:
    """Mirror of the PyTorch `Accuracy` module (no parameters)."""

    def __init__(self, topk=(1,), thresh=None):
        self.topk = topk
        self.thresh = thresh

    def __call__(self, pred, target):
        return accuracy_pallas(pred, target, self.topk, self.thresh)


def _accuracy_ref(pred, target, topk, thresh):
    """Pure-JAX reference for verification."""
    pred = pred.astype(jnp.float32)
    n, c = pred.shape
    tgt = target[:, None].astype(jnp.int32)
    tgt_score = jnp.take_along_axis(pred, tgt, axis=1)            # (N, 1)
    class_idx = jnp.arange(c, dtype=jnp.int32)[None, :]
    rank = jnp.sum((pred > tgt_score)
                   | ((pred == tgt_score) & (class_idx < tgt)), axis=1)
    ok = jnp.ones((n,), dtype=bool) if thresh is None else (tgt_score[:, 0] > thresh)
    return [100.0 * jnp.sum(((rank < k) & ok).astype(jnp.float32)) / n
            for k in topk]


if __name__ == "__main__":
    key = jax.random.PRNGKey(0)
    k1, k2, k3, k4 = jax.random.split(key, 4)

    # Case 1: small batch, with threshold, multiple k's.
    N1, C1 = 8, 16
    pred1 = jax.random.normal(k1, (N1, C1), dtype=jnp.float32)
    tgt1 = jax.random.randint(k2, (N1,), 0, C1, dtype=jnp.int32)
    topk1, thr1 = (1, 3), 0.1
    accs1 = AccuracyPallas(topk=topk1, thresh=thr1)(pred1, tgt1)
    accs1 = [jax.block_until_ready(a) for a in accs1]
    ref1 = _accuracy_ref(pred1, tgt1, topk1, thr1)
    for a, r in zip(accs1, ref1):
        assert abs(float(a) - float(r)) < 1e-4, (float(a), float(r))

    # Case 2: N not a multiple of the tile -> exercises partial-tile masking
    # and both core slices of the leading parallel grid axis.
    N2, C2 = 100, 16
    pred2 = jax.random.normal(k3, (N2, C2), dtype=jnp.float32)
    tgt2 = jax.random.randint(k4, (N2,), 0, C2, dtype=jnp.int32)
    topk2 = (1, 5)
    accs2 = accuracy_pallas(pred2, tgt2, topk2, thresh=None, tile_n=32)
    accs2 = [jax.block_until_ready(a) for a in accs2]
    ref2 = _accuracy_ref(pred2, tgt2, topk2, None)
    for a, r in zip(accs2, ref2):
        assert abs(float(a) - float(r)) < 1e-4, (float(a), float(r))

    # Case 3: default module path (topk=(1,), thresh=None) on bf16 input.
    acc3 = AccuracyPallas()(pred1.astype(jnp.bfloat16), tgt1)
    acc3 = [jax.block_until_ready(a) for a in acc3]
    ref3 = _accuracy_ref(pred1.astype(jnp.bfloat16), tgt1, (1,), None)
    assert abs(float(acc3[0]) - float(ref3[0])) < 1e-4, (float(acc3[0]), float(ref3[0]))

    print("KERNEL_OK")
</pallas_src>

<mosaic_0001>
module attributes {stable_mosaic.version = 11 : i64} {
  func.func @_accuracy_kernel(%arg0: i32, %arg1: i32, %arg2: memref<8x16xf32, #tpu.memory_space<vmem>>, %arg3: memref<8x1xi32, #tpu.memory_space<vmem>>, %arg4: memref<1x1x2xi32, #tpu.memory_space<vmem>>) attributes {dimension_semantics = [#tpu.dimension_semantics<parallel>, #tpu.dimension_semantics<arbitrary>], iteration_bounds = array<i64: 2, 1>, scalar_prefetch = 0 : i64, scratch_operands = 0 : i64, tpu.core_type = #tpu.core_type<tc>, window_params = [{transform_indices = @transform_0, window_bounds = array<i64: 8, 16>}, {transform_indices = @transform_1, window_bounds = array<i64: 8, 1>}, {transform_indices = @transform_2, window_bounds = array<i64: 1, 1, 2>}]} {
    %c0_i32 = arith.constant 0 : i32
    %0 = arith.cmpi eq, %arg1, %c0_i32 : i32
    %1 = arith.extui %0 : i1 to i32
    %c0_i32_0 = arith.constant 0 : i32
    %2 = arith.cmpi ne, %1, %c0_i32_0 : i32
    scf.if %2 {
      %c0_i32_19 = arith.constant 0 : i32
      %56 = vector.broadcast %c0_i32_19 : i32 to vector<1x1x2xi32>
      %c0_20 = arith.constant 0 : index
      %c0_21 = arith.constant 0 : index
      %c0_22 = arith.constant 0 : index
      %57 = vector.load %arg4[%c0_20, %c0_21, %c0_22] : memref<1x1x2xi32, #tpu.memory_space<vmem>>, vector<1x1x2xi32>
      tpu.vector_store %arg4[%c0_20, %c0_21, %c0_22], %56 {strides = array<i32>} : memref<1x1x2xi32, #tpu.memory_space<vmem>>, vector<1x1x2xi32>,
    } else {
    }
    %c0 = arith.constant 0 : index
    %c0_1 = arith.constant 0 : index
    %3 = vector.load %arg2[%c0, %c0_1] : memref<8x16xf32, #tpu.memory_space<vmem>>, vector<8x16xf32>
    %c0_2 = arith.constant 0 : index
    %c0_3 = arith.constant 0 : index
    %4 = vector.load %arg3[%c0_2, %c0_3] : memref<8x1xi32, #tpu.memory_space<vmem>>, vector<8x1xi32>
    %5 = tpu.iota {dimensions = array<i32: 1>} : vector<8x16xi32>
    %6 = vector.broadcast %4 : vector<8x1xi32> to vector<8x16xi32>
    %7 = arith.cmpi eq, %5, %6 : vector<8x16xi32>
    %cst = arith.constant 0.000000e+00 : f32
    %8 = vector.broadcast %cst : f32 to vector<8x16xf32>
    %9 = arith.select %7, %3, %8 : vector<8x16xi1>, vector<8x16xf32>
    %cst_4 = arith.constant dense<0.000000e+00> : vector<8xf32>
    %10 = vector.multi_reduction <add>, %9, %cst_4 [1] : vector<8x16xf32> to vector<8xf32>
    %11 = vector.shape_cast %10 : vector<8xf32> to vector<8x1xf32>
    %12 = vector.broadcast %11 : vector<8x1xf32> to vector<8x16xf32>
    %13 = arith.cmpf ogt, %3, %12 : vector<8x16xf32>
    %14 = vector.broadcast %11 : vector<8x1xf32> to vector<8x16xf32>
    %15 = arith.cmpf oeq, %3, %14 : vector<8x16xf32>
    %16 = vector.broadcast %4 : vector<8x1xi32> to vector<8x16xi32>
    %17 = arith.cmpi slt, %5, %16 : vector<8x16xi32>
    %18 = arith.andi %15, %17 : vector<8x16xi1>
    %19 = arith.ori %13, %18 : vector<8x16xi1>
    %20 = arith.extui %19 : vector<8x16xi1> to vector<8x16xi32>
    %cst_5 = arith.constant dense<0> : vector<8xi32>
    %21 = vector.multi_reduction <add>, %20, %cst_5 [1] : vector<8x16xi32> to vector<8xi32>
    %22 = vector.shape_cast %21 : vector<8xi32> to vector<8x1xi32>
    %23 = tpu.iota {dimensions = array<i32: 0>} : vector<8x1xi32>
    %c1_i32 = arith.constant 1 : i32
    %24 = arith.muli %arg0, %c1_i32 : i32
    %25 = arith.addi %24, %arg1 : i32
    %c8_i32 = arith.constant 8 : i32
    %26 = arith.muli %25, %c8_i32 : i32
    %27 = vector.broadcast %26 : i32 to vector<8x1xi32>
    %28 = arith.addi %23, %27 : vector<8x1xi32>
    %c8_i32_6 = arith.constant 8 : i32
    %29 = vector.broadcast %c8_i32_6 : i32 to vector<8x1xi32>
    %30 = arith.cmpi slt, %28, %29 : vector<8x1xi32>
    %cst_7 = arith.constant 1.000000e-01 : f32
    %31 = vector.broadcast %cst_7 : f32 to vector<8x1xf32>
    %32 = arith.cmpf ogt, %11, %31 : vector<8x1xf32>
    %33 = arith.andi %30, %32 : vector<8x1xi1>
    %34 = tpu.iota {dimensions = array<i32: 1>} : vector<1x2xi32>
    %c0_i32_8 = arith.constant 0 : i32
    %35 = vector.broadcast %c0_i32_8 : i32 to vector<1x2xi32>
    %c0_i32_9 = arith.constant 0 : i32
    %36 = vector.broadcast %c0_i32_9 : i32 to vector<1x2xi32>
    %37 = arith.cmpi eq, %34, %36 : vector<1x2xi32>
    %c1_i32_10 = arith.constant 1 : i32
    %38 = vector.broadcast %c1_i32_10 : i32 to vector<1x2xi32>
    %39 = arith.select %37, %38, %35 : vector<1x2xi1>, vector<1x2xi32>
    %c1_i32_11 = arith.constant 1 : i32
    %40 = vector.broadcast %c1_i32_11 : i32 to vector<1x2xi32>
    %41 = arith.cmpi eq, %34, %40 : vector<1x2xi32>
    %c3_i32 = arith.constant 3 : i32
    %42 = vector.broadcast %c3_i32 : i32 to vector<1x2xi32>
    %43 = arith.select %41, %42, %39 : vector<1x2xi1>, vector<1x2xi32>
    %44 = vector.broadcast %22 : vector<8x1xi32> to vector<8x2xi32>
    %45 = vector.broadcast %43 : vector<1x2xi32> to vector<8x2xi32>
    %46 = arith.cmpi slt, %44, %45 : vector<8x2xi32>
    %47 = vector.broadcast %33 : vector<8x1xi1> to vector<8x2xi1>
    %48 = arith.andi %46, %47 : vector<8x2xi1>
    %49 = arith.extui %48 : vector<8x2xi1> to vector<8x2xi32>
    %cst_12 = arith.constant dense<0> : vector<2xi32>
    %50 = vector.multi_reduction <add>, %49, %cst_12 [0] : vector<8x2xi32> to vector<2xi32>
    %51 = vector.shape_cast %50 : vector<2xi32> to vector<1x2xi32>
    %c0_13 = arith.constant 0 : index
    %c0_14 = arith.constant 0 : index
    %c0_15 = arith.constant 0 : index
    %52 = vector.load %arg4[%c0_13, %c0_14, %c0_15] : memref<1x1x2xi32, #tpu.memory_space<vmem>>, vector<1x1x2xi32>
    %53 = vector.shape_cast %51 : vector<1x2xi32> to vector<1x1x2xi32>
    %54 = arith.addi %52, %53 : vector<1x1x2xi32>
    %c0_16 = arith.constant 0 : index
    %c0_17 = arith.constant 0 : index
    %c0_18 = arith.constant 0 : index
    %55 = vector.load %arg4[%c0_16, %c0_17, %c0_18] : memref<1x1x2xi32, #tpu.memory_space<vmem>>, vector<1x1x2xi32>
    tpu.vector_store %arg4[%c0_16, %c0_17, %c0_18], %54 {strides = array<i32>} : memref<1x1x2xi32, #tpu.memory_space<vmem>>, vector<1x1x2xi32>,
    return
  }
  func.func @transform_0(%arg0: i32, %arg1: i32) -> (i32, i32) {
    %c1_i32 = arith.constant 1 : i32
    %0 = arith.muli %arg0, %c1_i32 : i32
    %1 = arith.addi %0, %arg1 : i32
    %c0_i32 = arith.constant 0 : i32
    %2 = arith.minsi %1, %c0_i32 : i32
    %c0_i32_0 = arith.constant 0 : i32
    %c0_i32_1 = arith.constant 0 : i32
    return %2, %c0_i32_0 : i32, i32
  }
  func.func @transform_1(%arg0: i32, %arg1: i32) -> (i32, i32) {
    %c1_i32 = arith.constant 1 : i32
    %0 = arith.muli %arg0, %c1_i32 : i32
    %1 = arith.addi %0, %arg1 : i32
    %c0_i32 = arith.constant 0 : i32
    %2 = arith.minsi %1, %c0_i32 : i32
    %c0_i32_0 = arith.constant 0 : i32
    %c0_i32_1 = arith.constant 0 : i32
    return %2, %c0_i32_0 : i32, i32
  }
  func.func @transform_2(%arg0: i32, %arg1: i32) -> (i32, i32, i32) {
    %c0_i32 = arith.constant 0 : i32
    %c0_i32_0 = arith.constant 0 : i32
    %c0_i32_1 = arith.constant 0 : i32
    return %arg0, %c0_i32, %c0_i32_0 : i32, i32, i32
  }
}

</mosaic_0001>

<llo_original>
// kernel: tpu_custom_call.1
$region0: #{tpu_custom_call.1}
  #allocation0 [shape = 'u32[]', space=smem, size = 0x4, offset = 0x4, fixed_abs, tag = 'smem constant byte address 0x4 - core index']
  #allocation1 [shape = 'u32[144,128]{1,0:T(1,128)}', space=vmem, size = 0x12000, scoped, tag = 'internal scratch']
  %s0 = inlined_call_operand.vmem [shape: f32[8,16], index: 0, kind: input, shape index: {}]
  %s1 = inlined_call_operand.vmem [shape: s32[8,1], index: 1, kind: input, shape index: {}]
  %s2 = inlined_call_operand.hbm [shape: s32[2,1,2], index: 2, kind: output, shape index: {}]
  %s3 = sld [smem:[#allocation0]]
  $region45: #{tpu_custom_call.1} parent=0
    _
  %s5 = ssub.s32 1, %s3
  %s6 = scalar_select 0, %s5, %s3
  $region1: #{tpu_custom_call.1} parent=0
    #allocation2 [shape = 'u8[1024]{0}', space=vmem, size = 0x400, scoped, tag = 'output window, operand 0']
    #allocation3 [shape = 's32[2]{0}', space=sflag, size = 0x8, scoped, tag = 'scoped memory for tpu_custom_call.1']
    %7 = vsyncpa [#allocation3], 0
    %s8 = scalar_lea.sflag [#allocation3], 1
    %9 = vsyncpa %s8, 0
    loop: start=0, step=1, limit=4
    $region2: #{tpu_custom_call.1} parent=1 // loop_pre_header
      _
    $region3: #{tpu_custom_call.1} parent=1 // loop_header
      %s11 = sphi 0, %s15
      %p12 = scmp.ge.s32.totalorder %s11, 4
      %s18 = sphi 0, %s30
      %s19 = sphi 0, %s26
      %s20 = sphi 0, %s18
      %s21 = sphi 0, %s19
      %s22 = sphi 0, %s20
      %s23 = sphi 0, %s21
      %s39 = sphi 0, %s41
      %s42 = sphi 0, %s39
      %s43 = sphi 0, %s42
      %s59 = sphi 0, %s43
      %s71 = sphi 0, %s73
      %s74 = sphi 0, %s71
      %s75 = sphi 0, %s74
      %s91 = sphi 0, %s75
      %s97 = sphi 0, %s99
      %s100 = sphi 0, %s97
      %s101 = sphi 0, %s100
      %s117 = sphi 0, %s101
    $region4: #{tpu_custom_call.1} parent=1 // loop_header_branch
      %14 = sbr.rel (%p12) target = $region8
    $region5: #{tpu_custom_call.1} parent=1 // loop_body
      %s16 = ssub.s32 %s11, 1
      %s17 = ssub.s32 %s11, 2
      %s24 = sadd.s32 1, %s19
      %p25 = scmp.ge.s32.totalorder %s24, 1
      %s26 = scalar_select %p25, 0, %s24
      %s27 = sadd.s32 1, %s18
      %s28 = scalar_select %p25, %s27, %s18
      %p29 = scmp.ge.s32.totalorder %s28, 2
      %s30 = scalar_select %p29, 0, %s28
      %s31 = sadd.s32 %s18, %s19
      %p32 = scmp.lt.s32.totalorder %s31, 0
      %s33 = scalar_select %p32, %s31, 0
      %s34 = sadd.s32 %s30, %s26
      %p35 = scmp.lt.s32.totalorder %s34, 0
      %s36 = scalar_select %p35, %s34, 0
      %s37 = ssub.s32 %s33, %s36
      %p38 = scmp.eq.s32.totalorder %s37, 0
      %s40 = sadd.s32 %s39, 1
      %s41 = scalar_select %p38, %s39, %s40
      %p44 = pneg %p38
      %p45 = scmp.eq.s32.totalorder %s11, 1
      %p46 = por %p44, %p45
      %p47 = scmp.ne.s32.totalorder %s39, %s42
      %p48 = scmp.eq.s32.totalorder %s11, 0
      %p49 = por %p47, %p48
      %p50 = scmp.ne.s32.totalorder %s39, %s42
      %p51 = scmp.eq.s32.totalorder %s16, 1
      %p52 = por %p50, %p51
      %p53 = scmp.ne.s32.totalorder %s42, %s43
      %p54 = scmp.eq.s32.totalorder %s16, 0
      %p55 = por %p53, %p54
      %p56 = scmp.ne.s32.totalorder %s42, %s43
      %p57 = scmp.eq.s32.totalorder %s17, 1
      %p58 = por %p56, %p57
      %p60 = scmp.ne.s32.totalorder %s43, %s59
      %p61 = scmp.eq.s32.totalorder %s17, 0
      %p62 = por %p60, %p61
      %s63 = sadd.s32 %s18, %s19
      %p64 = scmp.lt.s32.totalorder %s63, 0
      %s65 = scalar_select %p64, %s63, 0
      %s66 = sadd.s32 %s30, %s26
      %p67 = scmp.lt.s32.totalorder %s66, 0
      %s68 = scalar_select %p67, %s66, 0
      %s69 = ssub.s32 %s65, %s68
      %p70 = scmp.eq.s32.totalorder %s69, 0
      %s72 = sadd.s32 %s71, 1
      %s73 = scalar_select %p70, %s71, %s72
      %p76 = pneg %p70
      %p77 = scmp.eq.s32.totalorder %s11, 1
      %p78 = por %p76, %p77
      %p79 = scmp.ne.s32.totalorder %s71, %s74
      %p80 = scmp.eq.s32.totalorder %s11, 0
      %p81 = por %p79, %p80
      %p82 = scmp.ne.s32.totalorder %s71, %s74
      %p83 = scmp.eq.s32.totalorder %s16, 1
      %p84 = por %p82, %p83
      %p85 = scmp.ne.s32.totalorder %s74, %s75
      %p86 = scmp.eq.s32.totalorder %s16, 0
      %p87 = por %p85, %p86
      %p88 = scmp.ne.s32.totalorder %s74, %s75
      %p89 = scmp.eq.s32.totalorder %s17, 1
      %p90 = por %p88, %p89
      %p92 = scmp.ne.s32.totalorder %s75, %s91
      %p93 = scmp.eq.s32.totalorder %s17, 0
      %p94 = por %p92, %p93
      %s95 = ssub.s32 %s18, %s30
      %p96 = scmp.eq.s32.totalorder %s95, 0
      %s98 = sadd.s32 %s97, 1
      %s99 = scalar_select %p96, %s97, %s98
      %p102 = pneg %p96
      %p103 = scmp.eq.s32.totalorder %s11, 1
      %p104 = por %p102, %p103
      %p105 = scmp.ne.s32.totalorder %s97, %s100
      %p106 = scmp.eq.s32.totalorder %s11, 0
      %p107 = por %p105, %p106
      %p108 = scmp.ne.s32.totalorder %s97, %s100
      %p109 = scmp.eq.s32.totalorder %s16, 1
      %p110 = por %p108, %p109
      %p111 = scmp.ne.s32.totalorder %s100, %s101
      %p112 = scmp.eq.s32.totalorder %s16, 0
      %p113 = por %p111, %p112
      %p114 = scmp.ne.s32.totalorder %s100, %s101
      %p115 = scmp.eq.s32.totalorder %s17, 1
      %p116 = por %p114, %p115
      %p118 = scmp.ne.s32.totalorder %s101, %s117
      %p119 = scmp.eq.s32.totalorder %s17, 0
      %p120 = por %p118, %p119
      %p121 = scmp.le.s32.totalorder 1, %s11
      %p122 = scmp.lt.s32.totalorder %s11, 3
      %p123 = pnand %p121, %p122
      %p124 = pneg %p123
      // Predicated region
      $region9: #{tpu_custom_call.1} parent=5 // pred_check
        _
      $region10: #{tpu_custom_call.1} parent=5 // pred_check_branch
        %126 = sbr.rel (%p123) target = $region12
      $region11: #{tpu_custom_call.1} parent=5 // pred_region
        %s127 = ssub.s32 %s11, 1
      $region12: #{tpu_custom_call.1} parent=5 // pred_fallthru
        _
      %p128 = scmp.lt.s32.totalorder %s11, 2
      // Predicated region
      $region13: #{tpu_custom_call.1} parent=5 // pred_check
        %p129 = pneg %p128
      $region14: #{tpu_custom_call.1} parent=5 // pred_check_branch
        %131 = sbr.rel (%p129) target = $region16
      $region15: #{tpu_custom_call.1} parent=5 // pred_region
        // Predicated region
        $region17: #{tpu_custom_call.1} parent=15 // pred_check
          %p132 = pneg %p49
        $region18: #{tpu_custom_call.1} parent=15 // pred_check_branch
          %134 = sbr.rel (%p132) target = $region20
        $region19: #{tpu_custom_call.1} parent=15 // pred_region
          %s135 = sadd.s32 %s18, %s19
          %p136 = scmp.lt.s32.totalorder %s135, 0
          %s137 = scalar_select %p136, %s135, 0
          %p138 = scmp.lt.s32.totalorder %s137, 0
          %s139 = scalar_select %p138, %s137, 0
          %s140 = smul.addr %s139, 8
          %s141 = scalar_lea.vmem %s0, %s140
          %s142 = sadd.s32 %s18, %s19
          %p143 = scmp.lt.s32.totalorder %s142, 0
          %s144 = scalar_select %p143, %s142, 0
        $region20: #{tpu_custom_call.1} parent=15 // pred_fallthru
          _
        // Predicated region
        $region21: #{tpu_custom_call.1} parent=15 // pred_check
          %p145 = pneg %p81
        $region22: #{tpu_custom_call.1} parent=15 // pred_check_branch
          %147 = sbr.rel (%p145) target = $region24
        $region23: #{tpu_custom_call.1} parent=15 // pred_region
          %s148 = sadd.s32 %s18, %s19
          %p149 = scmp.lt.s32.totalorder %s148, 0
          %s150 = scalar_select %p149, %s148, 0
          %p151 = scmp.lt.s32.totalorder %s150, 0
          %s152 = scalar_select %p151, %s150, 0
          %s153 = smul.addr %s152, 8
          %s154 = scalar_lea.vmem %s1, %s153
          %s155 = sadd.s32 %s18, %s19
          %p156 = scmp.lt.s32.totalorder %s155, 0
          %s157 = scalar_select %p156, %s155, 0
        $region24: #{tpu_custom_call.1} parent=15 // pred_fallthru
          _
      $region16: #{tpu_custom_call.1} parent=5 // pred_fallthru
        _
      %p158 = scmp.le.s32.totalorder 1, %s11
      %p159 = scmp.lt.s32.totalorder %s11, 3
      %p160 = pnand %p158, %p159
      %p161 = pneg %p160
      // Predicated region
      $region25: #{tpu_custom_call.1} parent=5 // pred_check
        _
      $region26: #{tpu_custom_call.1} parent=5 // pred_check_branch
        %163 = sbr.rel (%p160) target = $region28
      $region27: #{tpu_custom_call.1} parent=5 // pred_region
        %s164 = ssub.s32 %s11, 1
        %s165 = sadd.s32 %s20, %s21
        %p166 = scmp.lt.s32.totalorder %s165, 0
        %s167 = scalar_select %p166, %s165, 0
        %p168 = scmp.lt.s32.totalorder %s167, 0
        %s169 = scalar_select %p168, %s167, 0
        %s170 = smul.addr %s169, 8
        %s171 = scalar_lea.vmem %s0, %s170
        %p172 = pneg %p55
        %p173 = pneg %p52
        %s174 = sadd.s32 %s20, %s21
        %p175 = scmp.lt.s32.totalorder %s174, 0
        %s176 = scalar_select %p175, %s174, 0
        %p177 = scmp.lt.s32.totalorder %s176, 0
        %s178 = scalar_select %p177, %s176, 0
        %s179 = smul.addr %s178, 8
        %s180 = scalar_lea.vmem %s1, %s179
        %p181 = pneg %p87
        %p182 = pneg %p84
        %p183 = pneg %p113
        %p184 = pneg %p110
        %s185 = sand.u32 %s100, 1
        %s186 = scalar_lea.sflag [#allocation3], %s185
        %s187 = sand.u32 %s100, 1
        %s188 = scalar_lea.vmem [#allocation2], %s187
        %s189 = sadd.s32 %s20, %s21
        %p190 = scmp.lt.s32.totalorder %s189, 0
        %s191 = scalar_select %p190, %s189, 0
        %p192 = scmp.lt.s32.totalorder %s191, 0
        %s193 = scalar_select %p192, %s191, 0
        %s194 = smul.addr %s193, 8
        %s195 = scalar_lea.vmem %s0, %s194
        %s196 = sadd.s32 %s20, %s21
        %p197 = scmp.lt.s32.totalorder %s196, 0
        %s198 = scalar_select %p197, %s196, 0
        %s199 = sadd.s32 %s20, %s21
        %p200 = scmp.lt.s32.totalorder %s199, 0
        %s201 = scalar_select %p200, %s199, 0
        %p202 = scmp.lt.s32.totalorder %s201, 0
        %s203 = scalar_select %p202, %s201, 0
        %s204 = smul.addr %s203, 8
        %s205 = scalar_lea.vmem %s1, %s204
        %s206 = sadd.s32 %s20, %s21
        %p207 = scmp.lt.s32.totalorder %s206, 0
        %s208 = scalar_select %p207, %s206, 0
        %p209 = scmp.eq.s32.totalorder %s21, 0
        // Predicated region
        $region29: #{tpu_custom_call.1} parent=27 // pred_check
          %p210 = pneg %p209
        $region30: #{tpu_custom_call.1} parent=27 // pred_check_branch
          %212 = sbr.rel (%p210) target = $region32
        $region31: #{tpu_custom_call.1} parent=27 // pred_region
          %vm213 = vcmask 8192
          %214 = vst.msk [vmem:[%s188] sm:$0x1] %vm213, 0
        $region32: #{tpu_custom_call.1} parent=27 // pred_fallthru
          _
        %v215 = vld [vmem:[%s195] sm:$0xff]
        %v216 = vld [vmem:[%s205] sm:$0xff]
        %v217 = vlaneseq
        %v218 = vand.u32 %v217, 127
        %219 = vset.pattern.permute.xlu0 0
        %220 = vperm.xlu0 %219, %v216
        %v221 = vpop.permute.xlu0 %220
        %vm222 = vcmp.eq.s32.totalorder %v218, %v221
        %v223 = vsel %vm222, %v215, 0.0
        %vm224 = vcmask 130048
        %v225 = vsel %vm224, %v223, 0.0
        %226 = vadd.xlane.f32.xlu0 %v225
        %v227 = vpop.xlane.xlu0 %226
        %vm228 = vcmp.gt.f32.partialorder %v215, %v227
        %vm229 = vcmp.eq.f32.partialorder %v215, %v227
        %vm230 = vcmp.lt.s32.totalorder %v218, %v221
        %vm231 = vmand %vm229, %vm230
        %vm232 = vmor %vm228, %vm231
        %v233 = vsel %vm232, 1, 0
        %v234 = vsel %vm224, %v233, 0
        %v235 = vand.u32 %v234, 65535
        %v236 = vshrl.u32 %v234, 16
        %v237 = vcvt.s32.f32 %v235
        %v238 = vcvt.s32.f32 %v236
        %239 = vadd.xlane.f32.xlu0 %v237
        %v240 = vpop.xlane.xlu0 %239
        %241 = vadd.xlane.f32.xlu0 %v238
        %v242 = vpop.xlane.xlu0 %241
        %v243 = vcvt.f32.s32 %v240
        %v244 = vcvt.f32.s32 %v242
        %v245 = vshll.u32 %v244, 16
        %v246 = vadd.s32 %v245, %v243
        %v247 = vlaneseq
        %v248 = vshrl.u32 %v247, 7
        %s249 = sadd.s32 %s20, %s21
        %s250 = smul.u32 %s249, 8
        %v251 = vstv %s250
        %v252 = vadd.s32 %v248, %v251
        %vm253 = vcmp.lt.s32.totalorder %v252, 8
        %vm254 = vcmp.gt.f32.partialorder %v227, 0.1
        %vm255 = vmand %vm253, %vm254
        %vm256 = vcmp.eq.s32.totalorder %v218, 0
        %v257 = vsel %vm256, 1, 0
        %vm258 = vcmp.eq.s32.totalorder %v218, 1
        %v259 = vsel %vm258, 3, %v257
        %vm260 = vcmp.lt.s32.totalorder %v246, %v259
        %v261 = vsel %vm255, 1, 0
        %vm262 = vcmp.eq.s32.totalorder %v261, 1
        %vm263 = vmand %vm260, %vm262
        %v264 = vsel %vm263, 1, 0
        %vm265 = vcmask 15360
        %v266 = vsel %vm265, %v264, 0
        %v267 = vrot.slane %v266, 4
        %v268 = vadd.s32 %v266, %v267
        %v269 = vrot.slane %v268, 2
        %v270 = vadd.s32 %v268, %v269
        %v271 = vrot.slane %v270, 1
        %v272 = vadd.s32 %v270, %v271
        %v273 = vld [vmem:[%s188] sm:$0x1]
        %v274 = vadd.s32 %v273, %v272
        %vm275 = vcmask 8192
        %276 = vst.msk [vmem:[%s188] sm:$0x1] %vm275, %v274
        %s277 = sand.u32 %s100, 1
        %s278 = scalar_lea.sflag [#allocation3], %s277
        %s279 = sand.u32 %s100, 1
        %s280 = scalar_lea.vmem [#allocation2], %s279
        // Predicated region
        $region33: #{tpu_custom_call.1} parent=27 // pred_check
          %p281 = pneg %p110
        $region34: #{tpu_custom_call.1} parent=27 // pred_check_branch
          %283 = sbr.rel (%p281) target = $region36
        $region35: #{tpu_custom_call.1} parent=27 // pred_region
          %s285 = ssub.s32 16, 16
          %286 = vsyncadd %s278, %s285
          %s287 = smul.addr %s20, 16
          %s288 = scalar_lea.hbm %s2, %s287
          %s290 = sshll.u32 %s280, 4
          %s291 = int_to_ptr.vmem [resolvable:$true] %s290
          %293 = dma.vmem_to_hbm [thread:$0]  %s291, 16, %s288, %s278
        $region36: #{tpu_custom_call.1} parent=27 // pred_fallthru
          _
      $region28: #{tpu_custom_call.1} parent=5 // pred_fallthru
        _
      %p294 = scmp.le.s32.totalorder 2, %s11
      // Predicated region
      $region37: #{tpu_custom_call.1} parent=5 // pred_check
        %p295 = pneg %p294
      $region38: #{tpu_custom_call.1} parent=5 // pred_check_branch
        %297 = sbr.rel (%p295) target = $region40
      $region39: #{tpu_custom_call.1} parent=5 // pred_region
        %s298 = ssub.s32 %s11, 2
        // Predicated region
        $region41: #{tpu_custom_call.1} parent=39 // pred_check
          %p299 = pneg %p116
        $region42: #{tpu_custom_call.1} parent=39 // pred_check_branch
          %301 = sbr.rel (%p299) target = $region44
        $region43: #{tpu_custom_call.1} parent=39 // pred_region
          %s302 = sand.u32 %s101, 1
          %s303 = scalar_lea.sflag [#allocation3], %s302
          %s304 = sand.u32 %s101, 1
          %s305 = scalar_lea.vmem [#allocation2], %s304
          %306 = dma.done %s303, 16
        $region44: #{tpu_custom_call.1} parent=39 // pred_fallthru
          _
      $region40: #{tpu_custom_call.1} parent=5 // pred_fallthru
        _
    $region6: #{tpu_custom_call.1} parent=1 // loop_footer
      %s15 = sadd.s32 1, %s11
    $region7: #{tpu_custom_call.1} parent=1 // loop_footer_branch
      %10 = sbr.rel target = $region3
    $region8: #{tpu_custom_call.1} parent=1 // loop_exit
      _
    %307 = vsyncpa [#allocation3], 1
    %s308 = scalar_lea.sflag [#allocation3], 1
    %309 = vsyncpa %s308, 1

</llo_original>
